<compile_context>
chip_gen: v5e
topology: v5e:2x2
jax: 0.10.0
libtpu: 0.0.40
codegen_flags: <defaults>
</compile_context>

<pallas_src>
import functools

import jax
import jax.numpy as jnp
from jax.experimental import pallas as pl
from jax.experimental.pallas import tpu as pltpu

_LANE = 128      # feature dims padded to a multiple of the lane width


def _round_up(n, m):
    return (n + m - 1) // m * m


def _cdiv(a, b):
    return (a + b - 1) // b


def _sublane(dtype):
    """Native sublane tile height for a dtype (sub-32-bit types pack sublanes)."""
    return {4: 8, 2: 16, 1: 32}.get(jnp.dtype(dtype).itemsize, 8)


def _device_kind():
    try:
        return jax.devices()[0].device_kind.lower()
    except Exception:
        return ""


def _is_v7x(kind):
    return ("v7" in kind) or ("tpu7" in kind) or ("7x" in kind)


def _vmem_cap_bytes(kind):
    """Generation-aware VMEM budget (leave headroom for compiler scratch)."""
    phys = None
    try:
        phys = int(pltpu.get_tpu_info().vmem_capacity_bytes)
    except Exception:
        phys = None
    if phys is None:
        phys = (64 << 20) if _is_v7x(kind) else (128 << 20)
    if phys <= (64 << 20):
        return phys - (12 << 20)                  # v7x: ~52 MiB of 64 MiB physical
    return min(phys - (24 << 20), 104 << 20)      # v5e/v6e: ~100-104 MiB of 128 MiB


def _param_spec(shape):
    """VMEM-resident parameter block: constant index_map, single-buffered."""
    if hasattr(pl, "Buffered"):
        try:
            return pl.BlockSpec(shape, lambda i: (0, 0),
                                pipeline_mode=pl.Buffered(1))
        except TypeError:
            pass
    return pl.BlockSpec(shape, lambda i: (0, 0))


def _mlp_kernel(*refs, n_layers, out_activation, compute_dtype):
    # refs = (x_ref, w0, b0, w1, b1, ..., w_{L-1}, b_{L-1}, o_ref)
    x_ref = refs[0]
    o_ref = refs[-1]
    wb = refs[1:-1]

    h = x_ref[...]                                 # already in compute_dtype
    for li in range(n_layers):
        w = wb[2 * li][...]                        # compute_dtype MXU operand
        b = wb[2 * li + 1][...]                    # f32 bias -> exact add
        acc = jnp.dot(h, w, preferred_element_type=jnp.float32) + b
        last = li == n_layers - 1
        if last:
            if out_activation:
                acc = jnp.tanh(acc)
            o_ref[...] = acc.astype(o_ref.dtype)
        else:
            if jnp.dtype(compute_dtype) == jnp.dtype(jnp.bfloat16):
                # bf16 tanh: v6e/v7x EUP is bf16-capable (halves transcendental width)
                h = jnp.tanh(acc.astype(compute_dtype))
            else:
                h = jnp.tanh(acc).astype(compute_dtype)


def prepare_mlp_params(params, mxu_dtype=jnp.float32):
    """Pad/cast parameters ONCE (hoisted out of the per-call path).

    params: list of (W [in, out], b [out]) -- torch weights pre-transposed.
    mxu_dtype: dtype fed to the MXU; pass jnp.bfloat16 to trade a little
               accuracy for ~3x MXU throughput on f32 networks.
    """
    compute_dtype = jnp.dtype(mxu_dtype)
    dims = [params[0][0].shape[0]] + [w.shape[1] for (w, _) in params]
    pdims = [_round_up(d, _LANE) for d in dims]
    padded = []
    for li, (w, b) in enumerate(params):
        # zero-padding is semantics-preserving: padded input rows of W multiply
        # zero activations, padded output cols get 0 bias and tanh(0)=0, so the
        # padded lanes stay zero through every layer.
        w_p = jnp.pad(w, ((0, pdims[li] - w.shape[0]),
                          (0, pdims[li + 1] - w.shape[1]))).astype(compute_dtype)
        b_p = jnp.pad(b.reshape(1, -1),
                      ((0, 0), (0, pdims[li + 1] - b.shape[0]))).astype(jnp.float32)
        padded.append((w_p, b_p))
    return dict(padded=padded, pdims=pdims, compute_dtype=compute_dtype,
                in_size=dims[0], out_size=dims[-1])


def mlp_block_pallas(x, prepared, out_activation=False, tile_b=512):
    """x: [B, input_size]; prepared: output of prepare_mlp_params()."""
    B, in_size = x.shape
    assert in_size == prepared["in_size"]
    padded = prepared["padded"]
    pdims = prepared["pdims"]
    compute_dtype = prepared["compute_dtype"]
    out_size = prepared["out_size"]
    n_layers = len(padded)
    out_dtype = x.dtype

    kind = _device_kind()
    vmem_cap = _vmem_cap_bytes(kind)
    sub = _sublane(compute_dtype)
    c_itemsize = jnp.dtype(compute_dtype).itemsize
    o_itemsize = jnp.dtype(out_dtype).itemsize
    out_pad = pdims[-1]
    max_pdim = max(pdims)

    # parameters are single-buffered (constant index_map -> never re-streamed)
    param_bytes = sum(int(w.nbytes) + int(b.nbytes) for (w, b) in padded)

    def tiling(n_tiles):
        t = _round_up(_cdiv(B, n_tiles), sub)
        return t, t * n_tiles

    # balanced batch tiles: avoids padding a near-empty trailing tile
    n_tiles = max(1, _cdiv(B, tile_b))
    # v7x has 2 TensorCores: make sure the "parallel" grid axis has >= 2 steps
    if _is_v7x(kind) and n_tiles == 1 and B > sub:
        n_tiles = 2
    tile_b_eff, B_pad = tiling(n_tiles)

    def vmem_needed(t):
        x_tile = t * pdims[0] * c_itemsize
        o_tile = t * out_pad * o_itemsize
        inter = 2 * t * max_pdim * 4               # f32 accumulator + staging
        return 2 * (x_tile + o_tile) + param_bytes + inter

    # shrink the batch tile until the resident-weights design fits the budget
    while vmem_needed(tile_b_eff) > vmem_cap and tile_b_eff > sub:
        n_tiles *= 2
        tile_b_eff, B_pad = tiling(n_tiles)
    if vmem_needed(tile_b_eff) > vmem_cap:
        # TODO(synk): stream weights over a K/N grid axis (or pltpu.emit_pipeline)
        # for models whose padded parameters alone exceed the VMEM budget.
        raise ValueError("mlp_block_pallas: padded parameters do not fit in VMEM")

    grid = (B_pad // tile_b_eff,)
    x_p = jnp.pad(x, ((0, B_pad - B), (0, pdims[0] - in_size))).astype(compute_dtype)

    flat_args = [x_p]
    # streamed activations keep the default 2-deep double-buffering.
    # TODO(synk): raise the x spec to pl.Buffered(3) if profiling shows exposed DMA.
    in_specs = [pl.BlockSpec((tile_b_eff, pdims[0]), lambda i: (i, 0))]
    for (w_p, b_p) in padded:
        flat_args.append(w_p)
        in_specs.append(_param_spec(w_p.shape))
        flat_args.append(b_p)
        in_specs.append(_param_spec(b_p.shape))

    need = vmem_needed(tile_b_eff)
    vmem_limit = int(min(vmem_cap, max(need + (2 << 20), 16 << 20)))

    # advisory cost estimate for XLA scheduling
    flops = 2 * B_pad * sum(pdims[i] * pdims[i + 1] for i in range(n_layers))
    transcendentals = B_pad * sum(pdims[1:-1])
    if out_activation:
        transcendentals += B_pad * out_pad
    bytes_accessed = int(x_p.nbytes) + param_bytes + B_pad * out_pad * o_itemsize
    cost = pl.CostEstimate(flops=int(flops),
                           transcendentals=int(transcendentals),
                           bytes_accessed=int(bytes_accessed))

    kernel = functools.partial(_mlp_kernel, n_layers=n_layers,
                               out_activation=out_activation,
                               compute_dtype=compute_dtype)

    out_p = pl.pallas_call(
        kernel,
        out_shape=jax.ShapeDtypeStruct((B_pad, out_pad), out_dtype),
        grid=grid,
        in_specs=in_specs,
        out_specs=pl.BlockSpec((tile_b_eff, out_pad), lambda i: (i, 0)),
        compiler_params=pltpu.CompilerParams(
            dimension_semantics=("parallel",),     # megacore sharding on v7x
            vmem_limit_bytes=vmem_limit),
        cost_estimate=cost,
    )(*flat_args)

    # slice away batch + lane padding
    return out_p[:B, :out_size]


def init_mlp_params(key, input_size, hidden_layer, neural_size, out_size):
    """Deterministic init mirroring the layer shapes of mlp_block.__init__."""
    dims = [input_size] + list(neural_size) + [out_size]
    assert len(neural_size) == hidden_layer + 1
    params = []
    for i in range(len(dims) - 1):
        fan_in, fan_out = dims[i], dims[i + 1]
        key, kw, kb = jax.random.split(key, 3)
        bound = 1.0 / jnp.sqrt(fan_in)
        # stored as [in, out] (pre-transposed torch weight)
        w = jax.random.uniform(kw, (fan_in, fan_out), jnp.float32, -bound, bound)
        b = jax.random.uniform(kb, (fan_out,), jnp.float32, -bound, bound)
        params.append((w, b))
    return params


def mlp_block_ref(x, params, out_activation=False):
    h = x
    for li, (w, b) in enumerate(params):
        h = h @ w + b
        if li < len(params) - 1 or out_activation:
            h = jnp.tanh(h)
    return h


if __name__ == "__main__":
    key = jax.random.PRNGKey(0)

    # Module config: input_size=32, hidden_layer=1, neural_size=[32, 32], out_size=16
    input_size, hidden_layer, neural_size, out_size = 32, 1, [32, 32], 16
    batch = 8

    key, kx = jax.random.split(key)
    x = jax.random.normal(kx, (batch, input_size), jnp.float32)

    params = init_mlp_params(key, input_size, hidden_layer, neural_size, out_size)

    # pad / cast parameters once (hoisted out of the per-call path)
    prepared = prepare_mlp_params(params, mxu_dtype=jnp.float32)

    out = mlp_block_pallas(x, prepared, out_activation=False)
    out = jax.block_until_ready(out)

    ref = mlp_block_ref(x, params, out_activation=False)
    assert out.shape == (batch, out_size)
    assert jnp.allclose(out, ref, atol=1e-5, rtol=1e-5)

    print("KERNEL_OK")
</pallas_src>

<mosaic_0001>
module attributes {stable_mosaic.version = 11 : i64} {
  func.func @_mlp_kernel(%arg0: i32, %arg1: memref<8x128xf32, #tpu.memory_space<vmem>>, %arg2: memref<128x128xf32, #tpu.memory_space<vmem>>, %arg3: memref<1x128xf32, #tpu.memory_space<vmem>>, %arg4: memref<128x128xf32, #tpu.memory_space<vmem>>, %arg5: memref<1x128xf32, #tpu.memory_space<vmem>>, %arg6: memref<128x128xf32, #tpu.memory_space<vmem>>, %arg7: memref<1x128xf32, #tpu.memory_space<vmem>>, %arg8: memref<8x128xf32, #tpu.memory_space<vmem>>) attributes {dimension_semantics = [#tpu.dimension_semantics<parallel>], iteration_bounds = array<i64: 1>, scalar_prefetch = 0 : i64, scratch_operands = 0 : i64, tpu.core_type = #tpu.core_type<tc>, window_params = [{transform_indices = @transform_0, window_bounds = array<i64: 8, 128>}, {pipeline_mode = #tpu.pipeline_mode<synchronous>, transform_indices = @transform_1, window_bounds = array<i64: 128, 128>}, {pipeline_mode = #tpu.pipeline_mode<synchronous>, transform_indices = @transform_2, window_bounds = array<i64: 1, 128>}, {pipeline_mode = #tpu.pipeline_mode<synchronous>, transform_indices = @transform_3, window_bounds = array<i64: 128, 128>}, {pipeline_mode = #tpu.pipeline_mode<synchronous>, transform_indices = @transform_4, window_bounds = array<i64: 1, 128>}, {pipeline_mode = #tpu.pipeline_mode<synchronous>, transform_indices = @transform_5, window_bounds = array<i64: 128, 128>}, {pipeline_mode = #tpu.pipeline_mode<synchronous>, transform_indices = @transform_6, window_bounds = array<i64: 1, 128>}, {transform_indices = @transform_7, window_bounds = array<i64: 8, 128>}]} {
    %c0 = arith.constant 0 : index
    %c0_0 = arith.constant 0 : index
    %0 = vector.load %arg1[%c0, %c0_0] : memref<8x128xf32, #tpu.memory_space<vmem>>, vector<8x128xf32>
    %c0_1 = arith.constant 0 : index
    %c0_2 = arith.constant 0 : index
    %1 = vector.load %arg2[%c0_1, %c0_2] : memref<128x128xf32, #tpu.memory_space<vmem>>, vector<128x128xf32>
    %c0_3 = arith.constant 0 : index
    %c0_4 = arith.constant 0 : index
    %2 = vector.load %arg3[%c0_3, %c0_4] : memref<1x128xf32, #tpu.memory_space<vmem>>, vector<1x128xf32>
    %cst = arith.constant dense<0.000000e+00> : vector<8x128xf32>
    %3 = tpu.matmul %0, %1, %cst {dimension_numbers = #tpu.dot_dimension_numbers<[1], [0], [0], [1], [0, 0, 1, 1], [], []>} : vector<8x128xf32>, vector<128x128xf32>, vector<8x128xf32> -> vector<8x128xf32>
    %4 = vector.broadcast %2 : vector<1x128xf32> to vector<8x128xf32>
    %5 = arith.addf %3, %4 : vector<8x128xf32>
    %6 = math.tanh %5 : vector<8x128xf32>
    %c0_5 = arith.constant 0 : index
    %c0_6 = arith.constant 0 : index
    %7 = vector.load %arg4[%c0_5, %c0_6] : memref<128x128xf32, #tpu.memory_space<vmem>>, vector<128x128xf32>
    %c0_7 = arith.constant 0 : index
    %c0_8 = arith.constant 0 : index
    %8 = vector.load %arg5[%c0_7, %c0_8] : memref<1x128xf32, #tpu.memory_space<vmem>>, vector<1x128xf32>
    %cst_9 = arith.constant dense<0.000000e+00> : vector<8x128xf32>
    %9 = tpu.matmul %6, %7, %cst_9 {dimension_numbers = #tpu.dot_dimension_numbers<[1], [0], [0], [1], [0, 0, 1, 1], [], []>} : vector<8x128xf32>, vector<128x128xf32>, vector<8x128xf32> -> vector<8x128xf32>
    %10 = vector.broadcast %8 : vector<1x128xf32> to vector<8x128xf32>
    %11 = arith.addf %9, %10 : vector<8x128xf32>
    %12 = math.tanh %11 : vector<8x128xf32>
    %c0_10 = arith.constant 0 : index
    %c0_11 = arith.constant 0 : index
    %13 = vector.load %arg6[%c0_10, %c0_11] : memref<128x128xf32, #tpu.memory_space<vmem>>, vector<128x128xf32>
    %c0_12 = arith.constant 0 : index
    %c0_13 = arith.constant 0 : index
    %14 = vector.load %arg7[%c0_12, %c0_13] : memref<1x128xf32, #tpu.memory_space<vmem>>, vector<1x128xf32>
    %cst_14 = arith.constant dense<0.000000e+00> : vector<8x128xf32>
    %15 = tpu.matmul %12, %13, %cst_14 {dimension_numbers = #tpu.dot_dimension_numbers<[1], [0], [0], [1], [0, 0, 1, 1], [], []>} : vector<8x128xf32>, vector<128x128xf32>, vector<8x128xf32> -> vector<8x128xf32>
    %16 = vector.broadcast %14 : vector<1x128xf32> to vector<8x128xf32>
    %17 = arith.addf %15, %16 : vector<8x128xf32>
    %c0_15 = arith.constant 0 : index
    %c0_16 = arith.constant 0 : index
    %18 = vector.load %arg8[%c0_15, %c0_16] : memref<8x128xf32, #tpu.memory_space<vmem>>, vector<8x128xf32>
    tpu.vector_store %arg8[%c0_15, %c0_16], %17 {strides = array<i32>} : memref<8x128xf32, #tpu.memory_space<vmem>>, vector<8x128xf32>,
    return
  }
  func.func @transform_0(%arg0: i32) -> (i32, i32) {
    %c0_i32 = arith.constant 0 : i32
    %c0_i32_0 = arith.constant 0 : i32
    return %arg0, %c0_i32 : i32, i32
  }
  func.func @transform_1(%arg0: i32) -> (i32, i32) {
    %c0_i32 = arith.constant 0 : i32
    %c0_i32_0 = arith.constant 0 : i32
    %c0_i32_1 = arith.constant 0 : i32
    return %c0_i32, %c0_i32_0 : i32, i32
  }
  func.func @transform_2(%arg0: i32) -> (i32, i32) {
    %c0_i32 = arith.constant 0 : i32
    %c0_i32_0 = arith.constant 0 : i32
    %c0_i32_1 = arith.constant 0 : i32
    return %c0_i32, %c0_i32_0 : i32, i32
  }
  func.func @transform_3(%arg0: i32) -> (i32, i32) {
    %c0_i32 = arith.constant 0 : i32
    %c0_i32_0 = arith.constant 0 : i32
    %c0_i32_1 = arith.constant 0 : i32
    return %c0_i32, %c0_i32_0 : i32, i32
  }
  func.func @transform_4(%arg0: i32) -> (i32, i32) {
    %c0_i32 = arith.constant 0 : i32
    %c0_i32_0 = arith.constant 0 : i32
    %c0_i32_1 = arith.constant 0 : i32
    return %c0_i32, %c0_i32_0 : i32, i32
  }
  func.func @transform_5(%arg0: i32) -> (i32, i32) {
    %c0_i32 = arith.constant 0 : i32
    %c0_i32_0 = arith.constant 0 : i32
    %c0_i32_1 = arith.constant 0 : i32
    return %c0_i32, %c0_i32_0 : i32, i32
  }
  func.func @transform_6(%arg0: i32) -> (i32, i32) {
    %c0_i32 = arith.constant 0 : i32
    %c0_i32_0 = arith.constant 0 : i32
    %c0_i32_1 = arith.constant 0 : i32
    return %c0_i32, %c0_i32_0 : i32, i32
  }
  func.func @transform_7(%arg0: i32) -> (i32, i32) {
    %c0_i32 = arith.constant 0 : i32
    %c0_i32_0 = arith.constant 0 : i32
    return %arg0, %c0_i32 : i32, i32
  }
}

</mosaic_0001>

<llo_original>
// kernel: tpu_custom_call.1
$region0: #{tpu_custom_call.1}
  #allocation0 [shape = 'u32[]', space=smem, size = 0x4, offset = 0x4, fixed_abs, tag = 'smem constant byte address 0x4 - core index']
  #allocation1 [shape = 'u32[72,128]{1,0:T(1,128)}', space=vmem, size = 0x9000, scoped, tag = 'internal scratch']
  %s0 = inlined_call_operand.hbm [shape: f32[8,128], index: 0, kind: input, shape index: {}]
  %s1 = inlined_call_operand.hbm [shape: f32[128,128], index: 1, kind: input, shape index: {}]
  %s2 = inlined_call_operand.vmem [shape: f32[1,128], index: 2, kind: input, shape index: {}]
  %s3 = inlined_call_operand.hbm [shape: f32[128,128], index: 3, kind: input, shape index: {}]
  %s4 = inlined_call_operand.vmem [shape: f32[1,128], index: 4, kind: input, shape index: {}]
  %s5 = inlined_call_operand.hbm [shape: f32[128,128], index: 5, kind: input, shape index: {}]
  %s6 = inlined_call_operand.vmem [shape: f32[1,128], index: 6, kind: input, shape index: {}]
  %s7 = inlined_call_operand.hbm [shape: f32[8,128], index: 7, kind: output, shape index: {}]
  %s8 = sld [smem:[#allocation0]]
  $region54: #{tpu_custom_call.1} parent=0
    _
  %s10 = ssub.s32 1, %s8
  %s11 = scalar_select 0, %s10, %s8
  $region1: #{tpu_custom_call.1} parent=0
    #allocation2 [shape = 'u8[4096]{0}', space=vmem, size = 0x1000, scoped, tag = 'input window, operand 0, single buffered']
    #allocation3 [shape = 's32[1]{0}', space=sflag, size = 0x4, scoped, tag = 'scoped memory for tpu_custom_call.1']
    #allocation4 [shape = 's32[1]{0}', space=sflag, size = 0x4, scoped, tag = 'scoped memory for tpu_custom_call.1']
    #allocation5 [shape = 'u8[65536]{0}', space=vmem, size = 0x10000, scoped, tag = 'input window, operand 1, single buffered']
    #allocation6 [shape = 's32[1]{0}', space=sflag, size = 0x4, scoped, tag = 'scoped memory for tpu_custom_call.1']
    #allocation7 [shape = 'u8[65536]{0}', space=vmem, size = 0x10000, scoped, tag = 'input window, operand 3, single buffered']
    #allocation8 [shape = 'u8[65536]{0}', space=vmem, size = 0x10000, scoped, tag = 'input window, operand 5, single buffered']
    #allocation9 [shape = 's32[1]{0}', space=sflag, size = 0x4, scoped, tag = 'scoped memory for tpu_custom_call.1']
    #allocation10 [shape = 'u8[4096]{0}', space=vmem, size = 0x1000, scoped, tag = 'output window, operand 0, single buffered']
    %12 = vsyncpa [#allocation3], 0
    %13 = vsyncpa [#allocation6], 0
    %14 = vsyncpa [#allocation9], 0
    %15 = vsyncpa [#allocation4], 0
    // Predicated region
    $region2: #{tpu_custom_call.1} parent=1 // pred_check
      _
    $region3: #{tpu_custom_call.1} parent=1 // pred_check_branch
      %17 = sbr.rel (0) target = $region5
    $region4: #{tpu_custom_call.1} parent=1 // pred_region
      %19 = vsyncadd [#allocation3], 0
      %s21 = sshll.u32 %s0, 4
      %s22 = int_to_ptr.hbm [resolvable:$true] %s21
      %s23 = sshll.u32 [#allocation2], 4
      %s24 = int_to_ptr.vmem [resolvable:$true] %s23
      %26 = dma.hbm_to_vmem [thread:$0]  %s22, 128, %s24, [#allocation3]
    $region5: #{tpu_custom_call.1} parent=1 // pred_fallthru
      _
    // Predicated region
    $region6: #{tpu_custom_call.1} parent=1 // pred_check
      _
    $region7: #{tpu_custom_call.1} parent=1 // pred_check_branch
      %28 = sbr.rel (0) target = $region9
    $region8: #{tpu_custom_call.1} parent=1 // pred_region
      %30 = vsyncadd [#allocation6], 0
      %s31 = sshll.u32 %s1, 4
      %s32 = int_to_ptr.hbm [resolvable:$true] %s31
      %s33 = sshll.u32 [#allocation5], 4
      %s34 = int_to_ptr.vmem [resolvable:$true] %s33
      %39 = dma.hbm_to_vmem [thread:$0]  %s32, 2048, %s34, [#allocation6], 128, 128, 8
    $region9: #{tpu_custom_call.1} parent=1 // pred_fallthru
      _
    // Predicated region
    $region10: #{tpu_custom_call.1} parent=1 // pred_check
      _
    $region11: #{tpu_custom_call.1} parent=1 // pred_check_branch
      %41 = sbr.rel (0) target = $region13
    $region12: #{tpu_custom_call.1} parent=1 // pred_region
      _
    $region13: #{tpu_custom_call.1} parent=1 // pred_fallthru
      _
    // Predicated region
    $region14: #{tpu_custom_call.1} parent=1 // pred_check
      _
    $region15: #{tpu_custom_call.1} parent=1 // pred_check_branch
      %43 = sbr.rel (0) target = $region17
    $region16: #{tpu_custom_call.1} parent=1 // pred_region
      %45 = vsyncadd [#allocation6], 0
      %s46 = sshll.u32 %s3, 4
      %s47 = int_to_ptr.hbm [resolvable:$true] %s46
      %s48 = sshll.u32 [#allocation7], 4
      %s49 = int_to_ptr.vmem [resolvable:$true] %s48
      %54 = dma.hbm_to_vmem [thread:$0]  %s47, 2048, %s49, [#allocation6], 128, 128, 8
    $region17: #{tpu_custom_call.1} parent=1 // pred_fallthru
      _
    // Predicated region
    $region18: #{tpu_custom_call.1} parent=1 // pred_check
      _
    $region19: #{tpu_custom_call.1} parent=1 // pred_check_branch
      %56 = sbr.rel (0) target = $region21
    $region20: #{tpu_custom_call.1} parent=1 // pred_region
      _
    $region21: #{tpu_custom_call.1} parent=1 // pred_fallthru
      _
    // Predicated region
    $region22: #{tpu_custom_call.1} parent=1 // pred_check
      _
    $region23: #{tpu_custom_call.1} parent=1 // pred_check_branch
      %58 = sbr.rel (0) target = $region25
    $region24: #{tpu_custom_call.1} parent=1 // pred_region
      %60 = vsyncadd [#allocation9], 0
      %s61 = sshll.u32 %s5, 4
      %s62 = int_to_ptr.hbm [resolvable:$true] %s61
      %s63 = sshll.u32 [#allocation8], 4
      %s64 = int_to_ptr.vmem [resolvable:$true] %s63
      %69 = dma.hbm_to_vmem [thread:$0]  %s62, 2048, %s64, [#allocation9], 128, 128, 8
    $region25: #{tpu_custom_call.1} parent=1 // pred_fallthru
      _
    // Predicated region
    $region26: #{tpu_custom_call.1} parent=1 // pred_check
      _
    $region27: #{tpu_custom_call.1} parent=1 // pred_check_branch
      %71 = sbr.rel (0) target = $region29
    $region28: #{tpu_custom_call.1} parent=1 // pred_region
      _
    $region29: #{tpu_custom_call.1} parent=1 // pred_fallthru
      _
    // Predicated region
    $region30: #{tpu_custom_call.1} parent=1 // pred_check
      _
    $region31: #{tpu_custom_call.1} parent=1 // pred_check_branch
      %73 = sbr.rel (0) target = $region33
    $region32: #{tpu_custom_call.1} parent=1 // pred_region
      %75 = dma.done [#allocation3], 128
    $region33: #{tpu_custom_call.1} parent=1 // pred_fallthru
      _
    // Predicated region
    $region34: #{tpu_custom_call.1} parent=1 // pred_check
      _
    $region35: #{tpu_custom_call.1} parent=1 // pred_check_branch
      %77 = sbr.rel (0) target = $region37
    $region36: #{tpu_custom_call.1} parent=1 // pred_region
      %79 = dma.done [#allocation6], 2048
    $region37: #{tpu_custom_call.1} parent=1 // pred_fallthru
      _
    // Predicated region
    $region38: #{tpu_custom_call.1} parent=1 // pred_check
      _
    $region39: #{tpu_custom_call.1} parent=1 // pred_check_branch
      %81 = sbr.rel (0) target = $region41
    $region40: #{tpu_custom_call.1} parent=1 // pred_region
      %83 = dma.done [#allocation6], 2048
    $region41: #{tpu_custom_call.1} parent=1 // pred_fallthru
      _
    // Predicated region
    $region42: #{tpu_custom_call.1} parent=1 // pred_check
      _
    $region43: #{tpu_custom_call.1} parent=1 // pred_check_branch
      %85 = sbr.rel (0) target = $region45
    $region44: #{tpu_custom_call.1} parent=1 // pred_region
      %87 = dma.done [#allocation9], 2048
    $region45: #{tpu_custom_call.1} parent=1 // pred_fallthru
      _
    %v88 = vld [vmem:[#allocation2] sm:$0xff]
    %v89 = vld [vmem:[#allocation5] sm:$0xff]
    %v90 = vld [vmem:[#allocation5 + $0x8] sm:$0xff]
    %v91 = vld [vmem:[#allocation5 + $0x10] sm:$0xff]
    %v92 = vld [vmem:[#allocation5 + $0x18] sm:$0xff]
    %v93 = vld [vmem:[#allocation5 + $0x20] sm:$0xff]
    %v94 = vld [vmem:[#allocation5 + $0x28] sm:$0xff]
    %v95 = vld [vmem:[#allocation5 + $0x30] sm:$0xff]
    %v96 = vld [vmem:[#allocation5 + $0x38] sm:$0xff]
    %v97 = vld [vmem:[#allocation5 + $0x40] sm:$0xff]
    %v98 = vld [vmem:[#allocation5 + $0x48] sm:$0xff]
    %v99 = vld [vmem:[#allocation5 + $0x50] sm:$0xff]
    %v100 = vld [vmem:[#allocation5 + $0x58] sm:$0xff]
    %v101 = vld [vmem:[#allocation5 + $0x60] sm:$0xff]
    %v102 = vld [vmem:[#allocation5 + $0x68] sm:$0xff]
    %v103 = vld [vmem:[#allocation5 + $0x70] sm:$0xff]
    %v104 = vld [vmem:[#allocation5 + $0x78] sm:$0xff]
    %v105 = vld [vmem:[%s2] sm:$0x1]
    %v107 = vperm.slane %v105, 0
    %109 = vmatpush.msra.mxu0 %v104
    %110 = vmatpush.msra.mxu0 %v103
    %111 = vmatpush.msra.mxu0 %v102
    %112 = vmatpush.msra.mxu0 %v101
    %113 = vmatpush.msra.mxu0 %v100
    %114 = vmatpush.msra.mxu0 %v99
    %115 = vmatpush.msra.mxu0 %v98
    %116 = vmatpush.msra.mxu0 %v97
    %117 = vmatpush.msra.mxu0 %v96
    %118 = vmatpush.msra.mxu0 %v95
    %119 = vmatpush.msra.mxu0 %v94
    %120 = vmatpush.msra.mxu0 %v93
    %121 = vmatpush.msra.mxu0 %v92
    %122 = vmatpush.msra.mxu0 %v91
    %123 = vmatpush.msra.mxu0 %v90
    %124 = vmatpush.msra.mxu0 %v89
    %125 = vmatmul.f32.gmra.mxu0 %v88
    %v126 = vpop.f32.mrf.mxu0
    %v127 = vadd.f32 %v107, %v126
    %128 = vdwg.mxu0
    %v129 = vtanh.pop %v127
    %v130 = vld [vmem:[#allocation7] sm:$0xff]
    %v131 = vld [vmem:[#allocation7 + $0x8] sm:$0xff]
    %v132 = vld [vmem:[#allocation7 + $0x10] sm:$0xff]
    %v133 = vld [vmem:[#allocation7 + $0x18] sm:$0xff]
    %v134 = vld [vmem:[#allocation7 + $0x20] sm:$0xff]
    %v135 = vld [vmem:[#allocation7 + $0x28] sm:$0xff]
    %v136 = vld [vmem:[#allocation7 + $0x30] sm:$0xff]
    %v137 = vld [vmem:[#allocation7 + $0x38] sm:$0xff]
    %v138 = vld [vmem:[#allocation7 + $0x40] sm:$0xff]
    %v139 = vld [vmem:[#allocation7 + $0x48] sm:$0xff]
    %v140 = vld [vmem:[#allocation7 + $0x50] sm:$0xff]
    %v141 = vld [vmem:[#allocation7 + $0x58] sm:$0xff]
    %v142 = vld [vmem:[#allocation7 + $0x60] sm:$0xff]
    %v143 = vld [vmem:[#allocation7 + $0x68] sm:$0xff]
    %v144 = vld [vmem:[#allocation7 + $0x70] sm:$0xff]
    %v145 = vld [vmem:[#allocation7 + $0x78] sm:$0xff]
    %v146 = vld [vmem:[%s4] sm:$0x1]
    %v148 = vperm.slane %v146, 0
    %150 = vmatpush.msra.mxu0 %v145
    %151 = vmatpush.msra.mxu0 %v144
    %152 = vmatpush.msra.mxu0 %v143
    %153 = vmatpush.msra.mxu0 %v142
    %154 = vmatpush.msra.mxu0 %v141
    %155 = vmatpush.msra.mxu0 %v140
    %156 = vmatpush.msra.mxu0 %v139
    %157 = vmatpush.msra.mxu0 %v138
    %158 = vmatpush.msra.mxu0 %v137
    %159 = vmatpush.msra.mxu0 %v136
    %160 = vmatpush.msra.mxu0 %v135
    %161 = vmatpush.msra.mxu0 %v134
    %162 = vmatpush.msra.mxu0 %v133
    %163 = vmatpush.msra.mxu0 %v132
    %164 = vmatpush.msra.mxu0 %v131
    %165 = vmatpush.msra.mxu0 %v130
    %166 = vmatmul.f32.gmra.mxu0 %v129
    %v167 = vpop.f32.mrf.mxu0
    %v168 = vadd.f32 %v148, %v167
    %169 = vdwg.mxu0
    %v170 = vtanh.pop %v168
    %v171 = vld [vmem:[#allocation8] sm:$0xff]
    %v172 = vld [vmem:[#allocation8 + $0x8] sm:$0xff]
    %v173 = vld [vmem:[#allocation8 + $0x10] sm:$0xff]
    %v174 = vld [vmem:[#allocation8 + $0x18] sm:$0xff]
    %v175 = vld [vmem:[#allocation8 + $0x20] sm:$0xff]
    %v176 = vld [vmem:[#allocation8 + $0x28] sm:$0xff]
    %v177 = vld [vmem:[#allocation8 + $0x30] sm:$0xff]
    %v178 = vld [vmem:[#allocation8 + $0x38] sm:$0xff]
    %v179 = vld [vmem:[#allocation8 + $0x40] sm:$0xff]
    %v180 = vld [vmem:[#allocation8 + $0x48] sm:$0xff]
    %v181 = vld [vmem:[#allocation8 + $0x50] sm:$0xff]
    %v182 = vld [vmem:[#allocation8 + $0x58] sm:$0xff]
    %v183 = vld [vmem:[#allocation8 + $0x60] sm:$0xff]
    %v184 = vld [vmem:[#allocation8 + $0x68] sm:$0xff]
    %v185 = vld [vmem:[#allocation8 + $0x70] sm:$0xff]
    %v186 = vld [vmem:[#allocation8 + $0x78] sm:$0xff]
    %v187 = vld [vmem:[%s6] sm:$0x1]
    %v189 = vperm.slane %v187, 0
    %191 = vmatpush.msra.mxu0 %v186
    %192 = vmatpush.msra.mxu0 %v185
    %193 = vmatpush.msra.mxu0 %v184
    %194 = vmatpush.msra.mxu0 %v183
    %195 = vmatpush.msra.mxu0 %v182
    %196 = vmatpush.msra.mxu0 %v181
    %197 = vmatpush.msra.mxu0 %v180
    %198 = vmatpush.msra.mxu0 %v179
    %199 = vmatpush.msra.mxu0 %v178
    %200 = vmatpush.msra.mxu0 %v177
    %201 = vmatpush.msra.mxu0 %v176
    %202 = vmatpush.msra.mxu0 %v175
    %203 = vmatpush.msra.mxu0 %v174
    %204 = vmatpush.msra.mxu0 %v173
    %205 = vmatpush.msra.mxu0 %v172
    %206 = vmatpush.msra.mxu0 %v171
    %207 = vmatmul.f32.gmra.mxu0 %v170
    %v208 = vpop.f32.mrf.mxu0
    %v209 = vadd.f32 %v189, %v208
    %210 = vdwg.mxu0
    %211 = vst [vmem:[#allocation10] sm:$0xff] %v209
    // Predicated region
    $region46: #{tpu_custom_call.1} parent=1 // pred_check
      _
    $region47: #{tpu_custom_call.1} parent=1 // pred_check_branch
      %213 = sbr.rel (0) target = $region49
    $region48: #{tpu_custom_call.1} parent=1 // pred_region
      %215 = vsyncadd [#allocation4], 0
      %s217 = sshll.u32 [#allocation10], 4
      %s218 = int_to_ptr.vmem [resolvable:$true] %s217
      %s219 = sshll.u32 %s7, 4
      %s220 = int_to_ptr.hbm [resolvable:$true] %s219
      %222 = dma.vmem_to_hbm [thread:$0]  %s218, 128, %s220, [#allocation4]
    $region49: #{tpu_custom_call.1} parent=1 // pred_fallthru
      _
    // Predicated region
    $region50: #{tpu_custom_call.1} parent=1 // pred_check
      _
    $region51: #{tpu_custom_call.1} parent=1 // pred_check_branch
      %224 = sbr.rel (0) target = $region53
    $region52: #{tpu_custom_call.1} parent=1 // pred_region
      %226 = dma.done [#allocation4], 128
    $region53: #{tpu_custom_call.1} parent=1 // pred_fallthru
      _
    %227 = vsyncpa [#allocation3], 1
    %228 = vsyncpa [#allocation6], 1
    %229 = vsyncpa [#allocation9], 1
    %230 = vsyncpa [#allocation4], 1

</llo_original>
